<compile_context>
chip_gen: v6e
topology: v6e:2x2x1
jax: 0.10.0
libtpu: 0.0.40
codegen_flags: <defaults>
</compile_context>

<pallas_src>
import functools

import jax
import jax.numpy as jnp
from jax import lax
from jax.experimental import pallas as pl
from jax.experimental.pallas import tpu as pltpu


def _ceil_div(a: int, b: int) -> int:
    return -(-a // b)


def dwconv_kernel(x_ref, w_ref, b_ref, o_ref, *,
                  K: int, stride: int, padding: int, mult: int, chunk: int):
    """One (channel tile, batch) step of a depthwise 1D conv.

    x_ref : (1, TC_in, L)    unpadded input slab for this channel tile
    w_ref : (TC, K)          per-output-channel filter taps
    b_ref : (TC, 1)          per-output-channel bias
    o_ref : (1, TC, L_out)   output slab
    """
    TC = o_ref.shape[1]
    TC_in = x_ref.shape[1]
    L = x_ref.shape[2]
    L_out = o_ref.shape[2]

    w = w_ref[...].astype(jnp.float32)            # (TC, K)
    b = b_ref[...].astype(jnp.float32)            # (TC, 1)

    def expand(v):
        # groups=in_channels with channel multiplier: output row t reads input
        # row t // mult.  Hoisted out of the tap loop (once per chunk).
        if mult == 1:
            return v
        # TODO(synk): switch to a reshape+broadcast formulation if jnp.repeat
        # along sublanes lowers poorly for some (TC_in, mult) combinations.
        return jnp.repeat(v, mult, axis=0)

    n_chunks = _ceil_div(L_out, chunk)
    for c in range(n_chunks):                     # static unroll over L_out chunks
        c0 = c * chunk
        cw = min(chunk, L_out - c0)
        acc = jnp.broadcast_to(b, (TC, cw))       # f32 accumulator, ~<= 64 KiB

        if stride == 1:
            # One halo'd slab per chunk, shared by all K taps.
            W = cw + K - 1                        # slab width (virtual padded coords)
            v0 = c0                               # virtual start of this chunk
            zl = min(W, max(0, padding - v0))     # left zero columns   (static)
            r0 = max(0, v0 - padding)             # first real column   (static)
            r1 = min(L, v0 + W - padding)         # past-last real col  (static)
            nreal = max(0, r1 - r0)
            zr = W - zl - nreal                   # right zero columns  (static)
            if nreal == 0:
                slab = jnp.zeros((TC_in, W), x_ref.dtype)
            else:
                parts = []
                if zl:
                    parts.append(jnp.zeros((TC_in, zl), x_ref.dtype))
                parts.append(x_ref[0, :, r0:r1])
                if zr:
                    parts.append(jnp.zeros((TC_in, zr), x_ref.dtype))
                slab = parts[0] if len(parts) == 1 else jnp.concatenate(parts, axis=1)
            slab = expand(slab.astype(jnp.float32))              # (TC, W)
            for k in range(K):
                # Static lane-shifted view of the shared slab (no extra ref read).
                acc = acc + w[:, k:k + 1] * slab[:, k:k + cw]
        else:
            # stride > 1: per-tap strided reads over the statically valid range.
            for k in range(K):
                base = c0 * stride + k - padding
                i_lo = max(0, _ceil_div(padding - k - c0 * stride, stride))
                i_hi = min(cw - 1, (L - 1 + padding - k - c0 * stride) // stride)
                if i_lo > i_hi:
                    continue                       # tap entirely in the zero padding
                nv = i_hi - i_lo + 1
                r0 = base + i_lo * stride          # >= 0 by construction
                xs = x_ref[0, :, pl.ds(r0, nv, stride)]
                xs = expand(xs.astype(jnp.float32))               # (TC, nv)
                parts = []
                if i_lo:
                    parts.append(jnp.zeros((TC, i_lo), jnp.float32))
                parts.append(xs)
                if cw - 1 - i_hi:
                    parts.append(jnp.zeros((TC, cw - 1 - i_hi), jnp.float32))
                xs = parts[0] if len(parts) == 1 else jnp.concatenate(parts, axis=1)
                acc = acc + w[:, k:k + 1] * xs

        o_ref[0, :, c0:c0 + cw] = acc.astype(o_ref.dtype)


def _hw_budgets():
    """(per-block VMEM budget, vmem_limit_bytes) from the detected chip generation."""
    try:
        cap = getattr(pltpu.get_tpu_info(), "vmem_capacity_bytes", None)
    except Exception:
        cap = None
    if cap is not None and cap >= 100 * 1024 * 1024:      # v5e / v6e: 128 MiB VMEM
        return 16 * 1024 * 1024, 96 * 1024 * 1024
    return 8 * 1024 * 1024, 44 * 1024 * 1024              # v7x (64 MiB) / unknown


def _pick_channel_tile(C_in, C_out, mult, L, L_out, itemsize, block_budget, batch):
    """Output-channel tile TC (and TC_in = TC // mult), dtype-aware sublane aligned."""
    sub = max(8, 32 // max(itemsize, 1))                  # f32: 8, bf16: 16, int8: 32
    # Double-buffered bytes per output channel (input row / mult + output row).
    per_out = 2 * ((L * itemsize + mult - 1) // mult + L_out * itemsize)
    cap = max(block_budget // max(per_out, 1), 1)

    def ok(tc):
        if C_out % tc or tc % mult:
            return False
        tci = tc // mult
        if tc % sub and tc != C_out:
            return False
        if tci % sub and tci != C_in:
            return False
        return True

    cands = [tc for tc in range(1, C_out + 1) if ok(tc)]  # always contains C_out
    # v7x megacore: want >= 2 total grid units; with batch == 1 prefer >= 2 tiles.
    par_cap = C_out if batch >= 2 else max(C_out // 2, 1)

    fit = [tc for tc in cands if tc <= min(cap, par_cap)]
    if not fit:
        fit = [tc for tc in cands if tc <= cap]
    tc = max(fit) if fit else min(cands)                  # smallest tile if over budget
    return tc, tc // mult


def _pick_chunk(TC, L_out):
    """L_out chunk width: (TC, chunk) f32 accumulator ~<= 64 KiB, 128-lane aligned."""
    target = (65536 // (4 * max(TC, 1))) // 128 * 128
    target = max(128, min(target, 2048))
    return L_out if L_out <= target else target


def depthwise_conv1d(x, weight, bias=None, *, stride: int = 1, padding: int = 0):
    """x: (N, C_in, L); weight: (C_out, 1, K); bias: (C_out,) or None.

    Matches torch.nn.Conv1d(C_in, C_out, K, groups=C_in, stride, padding).
    Returns (N, C_out, L_out).
    """
    N, C_in, L = x.shape
    C_out, _, K = weight.shape
    assert C_out % C_in == 0, "depthwise conv requires out_channels % in_channels == 0"
    mult = C_out // C_in
    L_out = (L + 2 * padding - K) // stride + 1
    assert L_out > 0, "output length must be positive"

    if bias is None:
        bias = jnp.zeros((C_out,), dtype=x.dtype)
    w2 = weight.reshape(C_out, K)
    b2 = bias.reshape(C_out, 1)

    block_budget, vmem_limit = _hw_budgets()
    TC, TC_in = _pick_channel_tile(C_in, C_out, mult, L, L_out,
                                   jnp.dtype(x.dtype).itemsize, block_budget, N)
    n_cblk = C_out // TC
    chunk = _pick_chunk(TC, L_out)

    kern = functools.partial(dwconv_kernel, K=K, stride=stride, padding=padding,
                             mult=mult, chunk=chunk)

    # TODO(synk): add a length-tiled grid axis (halo'd input blocks) for very long L
    # where even one channel-tile-by-L slab exceeds the block budget, and to
    # guarantee >= 2 parallel grid units on v7x when N * n_cblk == 1.
    # TODO(synk): for L_out < 128 the final store is a masked vst; a channels-last
    # (N, L, C) layout would make it lane-dense but changes the module's I/O layout.
    return pl.pallas_call(
        kern,
        out_shape=jax.ShapeDtypeStruct((N, C_out, L_out), x.dtype),
        # N innermost: weight/bias block indices are constant across the inner
        # loop, so Pallas skips their re-fetch every step.
        grid=(n_cblk, N),
        in_specs=[
            # Channel multiplier folded into the index_map: output-channel block c
            # reads input-channel block c (size TC_in = TC // mult); x is read from
            # HBM exactly once.
            pl.BlockSpec((1, TC_in, L), lambda c, n: (n, c, 0)),
            pl.BlockSpec((TC, K), lambda c, n: (c, 0)),
            pl.BlockSpec((TC, 1), lambda c, n: (c, 0)),
        ],
        out_specs=pl.BlockSpec((1, TC, L_out), lambda c, n: (n, c, 0)),
        compiler_params=pltpu.CompilerParams(
            dimension_semantics=("parallel", "parallel"),
            vmem_limit_bytes=vmem_limit,
        ),
    )(x, w2, b2)


if __name__ == "__main__":
    # Module config (small, consistent with DepthWiseConv):
    #   in_channels=4, out_channels=4, kernel_size=3, stride=1, padding=1, bias=True
    N, C_in, L = 2, 4, 16
    C_out, K, stride, padding = 4, 3, 1, 1

    key = jax.random.PRNGKey(0)
    kx, kw, kb = jax.random.split(key, 3)

    x = jax.random.normal(kx, (N, C_in, L), dtype=jnp.float32)

    # Deterministic init mimicking PyTorch Conv1d defaults:
    # fan_in = (in_channels / groups) * kernel_size = K; U(-1/sqrt(fan_in), 1/sqrt(fan_in))
    bound = 1.0 / (K ** 0.5)
    weight = jax.random.uniform(kw, (C_out, 1, K), minval=-bound, maxval=bound,
                                dtype=jnp.float32)
    bias = jax.random.uniform(kb, (C_out,), minval=-bound, maxval=bound,
                              dtype=jnp.float32)

    out = depthwise_conv1d(x, weight, bias, stride=stride, padding=padding)
    out = jax.block_until_ready(out)

    # Pure-JAX reference (grouped conv, feature_group_count = in_channels).
    ref = lax.conv_general_dilated(
        x, weight,
        window_strides=(stride,),
        padding=[(padding, padding)],
        dimension_numbers=("NCH", "OIH", "NCH"),
        feature_group_count=C_in,
    ) + bias[None, :, None]

    assert out.shape == (N, C_out, (L + 2 * padding - K) // stride + 1)
    assert jnp.allclose(out, ref, atol=1e-5, rtol=1e-5), "mismatch vs reference conv"

    print("KERNEL_OK")
</pallas_src>

<mosaic_0001>
module attributes {stable_mosaic.version = 11 : i64} {
  func.func @dwconv_kernel(%arg0: i32, %arg1: i32, %arg2: memref<1x4x16xf32, #tpu.memory_space<vmem>>, %arg3: memref<4x3xf32, #tpu.memory_space<vmem>>, %arg4: memref<4x1xf32, #tpu.memory_space<vmem>>, %arg5: memref<1x4x16xf32, #tpu.memory_space<vmem>>) attributes {dimension_semantics = [#tpu.dimension_semantics<parallel>, #tpu.dimension_semantics<parallel>], iteration_bounds = array<i64: 1, 2>, scalar_prefetch = 0 : i64, scratch_operands = 0 : i64, tpu.core_type = #tpu.core_type<tc>, window_params = [{transform_indices = @transform_0, window_bounds = array<i64: 1, 4, 16>}, {transform_indices = @transform_1, window_bounds = array<i64: 4, 3>}, {transform_indices = @transform_2, window_bounds = array<i64: 4, 1>}, {transform_indices = @transform_3, window_bounds = array<i64: 1, 4, 16>}]} {
    %c0 = arith.constant 0 : index
    %c0_0 = arith.constant 0 : index
    %0 = vector.load %arg3[%c0, %c0_0] : memref<4x3xf32, #tpu.memory_space<vmem>>, vector<4x3xf32>
    %c0_1 = arith.constant 0 : index
    %c0_2 = arith.constant 0 : index
    %1 = vector.load %arg4[%c0_1, %c0_2] : memref<4x1xf32, #tpu.memory_space<vmem>>, vector<4x1xf32>
    %2 = vector.shape_cast %1 : vector<4x1xf32> to vector<4x1xf32>
    %3 = vector.broadcast %2 : vector<4x1xf32> to vector<4x16xf32>
    %cst = arith.constant 0.000000e+00 : f32
    %4 = vector.broadcast %cst : f32 to vector<4x1xf32>
    %c0_3 = arith.constant 0 : index
    %c0_4 = arith.constant 0 : index
    %c0_5 = arith.constant 0 : index
    %5 = vector.load %arg2[%c0_3, %c0_4, %c0_5] : memref<1x4x16xf32, #tpu.memory_space<vmem>>, vector<1x4x16xf32>
    %6 = vector.shape_cast %5 : vector<1x4x16xf32> to vector<4x16xf32>
    %cst_6 = arith.constant 0.000000e+00 : f32
    %7 = vector.broadcast %cst_6 : f32 to vector<4x1xf32>
    %8 = tpu.concatenate %4, %6, %7 in 1 : vector<4x1xf32>, vector<4x16xf32>, vector<4x1xf32> -> vector<4x18xf32>
    %9 = vector.extract_strided_slice %0 {offsets = [0, 0], sizes = [4, 1], strides = [1, 1]} : vector<4x3xf32> to vector<4x1xf32>
    %10 = vector.extract_strided_slice %8 {offsets = [0, 0], sizes = [4, 16], strides = [1, 1]} : vector<4x18xf32> to vector<4x16xf32>
    %11 = vector.broadcast %9 : vector<4x1xf32> to vector<4x16xf32>
    %12 = arith.mulf %11, %10 : vector<4x16xf32>
    %13 = arith.addf %3, %12 : vector<4x16xf32>
    %14 = vector.extract_strided_slice %0 {offsets = [0, 1], sizes = [4, 1], strides = [1, 1]} : vector<4x3xf32> to vector<4x1xf32>
    %15 = vector.extract_strided_slice %8 {offsets = [0, 1], sizes = [4, 16], strides = [1, 1]} : vector<4x18xf32> to vector<4x16xf32>
    %16 = vector.broadcast %14 : vector<4x1xf32> to vector<4x16xf32>
    %17 = arith.mulf %16, %15 : vector<4x16xf32>
    %18 = arith.addf %13, %17 : vector<4x16xf32>
    %19 = vector.extract_strided_slice %0 {offsets = [0, 2], sizes = [4, 1], strides = [1, 1]} : vector<4x3xf32> to vector<4x1xf32>
    %20 = vector.extract_strided_slice %8 {offsets = [0, 2], sizes = [4, 16], strides = [1, 1]} : vector<4x18xf32> to vector<4x16xf32>
    %21 = vector.broadcast %19 : vector<4x1xf32> to vector<4x16xf32>
    %22 = arith.mulf %21, %20 : vector<4x16xf32>
    %23 = arith.addf %18, %22 : vector<4x16xf32>
    %c0_7 = arith.constant 0 : index
    %c0_8 = arith.constant 0 : index
    %c0_9 = arith.constant 0 : index
    %24 = vector.load %arg5[%c0_7, %c0_8, %c0_9] : memref<1x4x16xf32, #tpu.memory_space<vmem>>, vector<1x4x16xf32>
    %25 = vector.shape_cast %24 : vector<1x4x16xf32> to vector<4x16xf32>
    %26 = vector.shape_cast %23 : vector<4x16xf32> to vector<1x4x16xf32>
    tpu.vector_store %arg5[%c0_7, %c0_8, %c0_9], %26 {strides = array<i32>} : memref<1x4x16xf32, #tpu.memory_space<vmem>>, vector<1x4x16xf32>,
    return
  }
  func.func @transform_0(%arg0: i32, %arg1: i32) -> (i32, i32, i32) {
    %c0_i32 = arith.constant 0 : i32
    %c0_i32_0 = arith.constant 0 : i32
    return %arg1, %arg0, %c0_i32 : i32, i32, i32
  }
  func.func @transform_1(%arg0: i32, %arg1: i32) -> (i32, i32) {
    %c0_i32 = arith.constant 0 : i32
    %c0_i32_0 = arith.constant 0 : i32
    return %arg0, %c0_i32 : i32, i32
  }
  func.func @transform_2(%arg0: i32, %arg1: i32) -> (i32, i32) {
    %c0_i32 = arith.constant 0 : i32
    %c0_i32_0 = arith.constant 0 : i32
    return %arg0, %c0_i32 : i32, i32
  }
  func.func @transform_3(%arg0: i32, %arg1: i32) -> (i32, i32, i32) {
    %c0_i32 = arith.constant 0 : i32
    %c0_i32_0 = arith.constant 0 : i32
    return %arg1, %arg0, %c0_i32 : i32, i32, i32
  }
}

</mosaic_0001>

<llo_original>
// kernel: tpu_custom_call.1
$region0: #{tpu_custom_call.1}
  #allocation0 [shape = 'u32[]', space=smem, size = 0x4, offset = 0x4, fixed_abs, tag = 'smem constant byte address 0x4 - core index']
  #allocation1 [shape = 'u32[144,128]{1,0:T(1,128)}', space=vmem, size = 0x12000, scoped, tag = 'internal scratch']
  %s0 = inlined_call_operand.hbm [shape: f32[2,4,16], index: 0, kind: input, shape index: {}]
  %s1 = inlined_call_operand.vmem [shape: f32[4,3], index: 1, kind: input, shape index: {}]
  %s2 = inlined_call_operand.vmem [shape: f32[4,1], index: 2, kind: input, shape index: {}]
  %s3 = inlined_call_operand.hbm [shape: f32[2,4,16], index: 3, kind: output, shape index: {}]
  %s4 = sld [smem:[#allocation0]]
  $region49: #{tpu_custom_call.1} parent=0
    _
  %s6 = ssub.s32 1, %s4
  %s7 = scalar_select 0, %s6, %s4
  $region1: #{tpu_custom_call.1} parent=0
    #allocation2 [shape = 'u8[4096]{0}', space=vmem, size = 0x1000, scoped, tag = 'input window, operand 0']
    #allocation3 [shape = 's32[2]{0}', space=sflag, size = 0x8, scoped, tag = 'scoped memory for tpu_custom_call.1']
    #allocation4 [shape = 's32[2]{0}', space=sflag, size = 0x8, scoped, tag = 'scoped memory for tpu_custom_call.1']
    #allocation5 [shape = 'u8[4096]{0}', space=vmem, size = 0x1000, scoped, tag = 'output window, operand 0']
    %8 = vsyncpa [#allocation3], 0
    %s9 = scalar_lea.sflag [#allocation3], 1
    %10 = vsyncpa %s9, 0
    %11 = vsyncpa [#allocation4], 0
    %s12 = scalar_lea.sflag [#allocation4], 1
    %13 = vsyncpa %s12, 0
    loop: start=0, step=1, limit=4
    $region2: #{tpu_custom_call.1} parent=1 // loop_pre_header
      _
    $region3: #{tpu_custom_call.1} parent=1 // loop_header
      %s15 = sphi 0, %s19
      %p16 = scmp.ge.s32.totalorder %s15, 4
      %s22 = sphi 0, %s34
      %s23 = sphi 0, %s30
      %s24 = sphi 0, %s22
      %s25 = sphi 0, %s23
      %s26 = sphi 0, %s24
      %s27 = sphi 0, %s25
      %s39 = sphi 0, %s41
      %s42 = sphi 0, %s39
      %s43 = sphi 0, %s42
      %s59 = sphi 0, %s43
      %s65 = sphi 0, %s67
      %s68 = sphi 0, %s65
      %s69 = sphi 0, %s68
      %s85 = sphi 0, %s69
      %s91 = sphi 0, %s93
      %s94 = sphi 0, %s91
      %s95 = sphi 0, %s94
      %s111 = sphi 0, %s95
      %s119 = sphi 0, %s121
      %s122 = sphi 0, %s119
      %s123 = sphi 0, %s122
      %s139 = sphi 0, %s123
    $region4: #{tpu_custom_call.1} parent=1 // loop_header_branch
      %18 = sbr.rel (%p16) target = $region8
    $region5: #{tpu_custom_call.1} parent=1 // loop_body
      %s20 = ssub.s32 %s15, 1
      %s21 = ssub.s32 %s15, 2
      %s28 = sadd.s32 1, %s23
      %p29 = scmp.ge.s32.totalorder %s28, 2
      %s30 = scalar_select %p29, 0, %s28
      %s31 = sadd.s32 1, %s22
      %s32 = scalar_select %p29, %s31, %s22
      %p33 = scmp.ge.s32.totalorder %s32, 1
      %s34 = scalar_select %p33, 0, %s32
      %s35 = ssub.s32 %s23, %s30
      %s36 = ssub.s32 %s22, %s34
      %s37 = sor.u32 %s35, %s36
      %p38 = scmp.eq.s32.totalorder %s37, 0
      %s40 = sadd.s32 %s39, 1
      %s41 = scalar_select %p38, %s39, %s40
      %p44 = pneg %p38
      %p45 = scmp.eq.s32.totalorder %s15, 1
      %p46 = por %p44, %p45
      %p47 = scmp.ne.s32.totalorder %s39, %s42
      %p48 = scmp.eq.s32.totalorder %s15, 0
      %p49 = por %p47, %p48
      %p50 = scmp.ne.s32.totalorder %s39, %s42
      %p51 = scmp.eq.s32.totalorder %s20, 1
      %p52 = por %p50, %p51
      %p53 = scmp.ne.s32.totalorder %s42, %s43
      %p54 = scmp.eq.s32.totalorder %s20, 0
      %p55 = por %p53, %p54
      %p56 = scmp.ne.s32.totalorder %s42, %s43
      %p57 = scmp.eq.s32.totalorder %s21, 1
      %p58 = por %p56, %p57
      %p60 = scmp.ne.s32.totalorder %s43, %s59
      %p61 = scmp.eq.s32.totalorder %s21, 0
      %p62 = por %p60, %p61
      %s63 = ssub.s32 %s22, %s34
      %p64 = scmp.eq.s32.totalorder %s63, 0
      %s66 = sadd.s32 %s65, 1
      %s67 = scalar_select %p64, %s65, %s66
      %p70 = pneg %p64
      %p71 = scmp.eq.s32.totalorder %s15, 1
      %p72 = por %p70, %p71
      %p73 = scmp.ne.s32.totalorder %s65, %s68
      %p74 = scmp.eq.s32.totalorder %s15, 0
      %p75 = por %p73, %p74
      %p76 = scmp.ne.s32.totalorder %s65, %s68
      %p77 = scmp.eq.s32.totalorder %s20, 1
      %p78 = por %p76, %p77
      %p79 = scmp.ne.s32.totalorder %s68, %s69
      %p80 = scmp.eq.s32.totalorder %s20, 0
      %p81 = por %p79, %p80
      %p82 = scmp.ne.s32.totalorder %s68, %s69
      %p83 = scmp.eq.s32.totalorder %s21, 1
      %p84 = por %p82, %p83
      %p86 = scmp.ne.s32.totalorder %s69, %s85
      %p87 = scmp.eq.s32.totalorder %s21, 0
      %p88 = por %p86, %p87
      %s89 = ssub.s32 %s22, %s34
      %p90 = scmp.eq.s32.totalorder %s89, 0
      %s92 = sadd.s32 %s91, 1
      %s93 = scalar_select %p90, %s91, %s92
      %p96 = pneg %p90
      %p97 = scmp.eq.s32.totalorder %s15, 1
      %p98 = por %p96, %p97
      %p99 = scmp.ne.s32.totalorder %s91, %s94
      %p100 = scmp.eq.s32.totalorder %s15, 0
      %p101 = por %p99, %p100
      %p102 = scmp.ne.s32.totalorder %s91, %s94
      %p103 = scmp.eq.s32.totalorder %s20, 1
      %p104 = por %p102, %p103
      %p105 = scmp.ne.s32.totalorder %s94, %s95
      %p106 = scmp.eq.s32.totalorder %s20, 0
      %p107 = por %p105, %p106
      %p108 = scmp.ne.s32.totalorder %s94, %s95
      %p109 = scmp.eq.s32.totalorder %s21, 1
      %p110 = por %p108, %p109
      %p112 = scmp.ne.s32.totalorder %s95, %s111
      %p113 = scmp.eq.s32.totalorder %s21, 0
      %p114 = por %p112, %p113
      %s115 = ssub.s32 %s23, %s30
      %s116 = ssub.s32 %s22, %s34
      %s117 = sor.u32 %s115, %s116
      %p118 = scmp.eq.s32.totalorder %s117, 0
      %s120 = sadd.s32 %s119, 1
      %s121 = scalar_select %p118, %s119, %s120
      %p124 = pneg %p118
      %p125 = scmp.eq.s32.totalorder %s15, 1
      %p126 = por %p124, %p125
      %p127 = scmp.ne.s32.totalorder %s119, %s122
      %p128 = scmp.eq.s32.totalorder %s15, 0
      %p129 = por %p127, %p128
      %p130 = scmp.ne.s32.totalorder %s119, %s122
      %p131 = scmp.eq.s32.totalorder %s20, 1
      %p132 = por %p130, %p131
      %p133 = scmp.ne.s32.totalorder %s122, %s123
      %p134 = scmp.eq.s32.totalorder %s20, 0
      %p135 = por %p133, %p134
      %p136 = scmp.ne.s32.totalorder %s122, %s123
      %p137 = scmp.eq.s32.totalorder %s21, 1
      %p138 = por %p136, %p137
      %p140 = scmp.ne.s32.totalorder %s123, %s139
      %p141 = scmp.eq.s32.totalorder %s21, 0
      %p142 = por %p140, %p141
      %p143 = scmp.le.s32.totalorder 1, %s15
      %p144 = scmp.lt.s32.totalorder %s15, 3
      %p145 = pnand %p143, %p144
      %p146 = pneg %p145
      // Predicated region
      $region9: #{tpu_custom_call.1} parent=5 // pred_check
        _
      $region10: #{tpu_custom_call.1} parent=5 // pred_check_branch
        %148 = sbr.rel (%p145) target = $region12
      $region11: #{tpu_custom_call.1} parent=5 // pred_region
        %s149 = ssub.s32 %s15, 1
        // Predicated region
        $region13: #{tpu_custom_call.1} parent=11 // pred_check
          %p150 = pneg %p81
        $region14: #{tpu_custom_call.1} parent=11 // pred_check_branch
          %152 = sbr.rel (%p150) target = $region16
        $region15: #{tpu_custom_call.1} parent=11 // pred_region
          %p153 = scmp.lt.s32.totalorder %s24, 0
          %s154 = scalar_select %p153, %s24, 0
          %s155 = smul.addr %s154, 4
          %s156 = scalar_lea.vmem %s1, %s155
        $region16: #{tpu_custom_call.1} parent=11 // pred_fallthru
          _
        // Predicated region
        $region17: #{tpu_custom_call.1} parent=11 // pred_check
          %p157 = pneg %p107
        $region18: #{tpu_custom_call.1} parent=11 // pred_check_branch
          %159 = sbr.rel (%p157) target = $region20
        $region19: #{tpu_custom_call.1} parent=11 // pred_region
          %p160 = scmp.lt.s32.totalorder %s24, 0
          %s161 = scalar_select %p160, %s24, 0
          %s162 = smul.addr %s161, 4
          %s163 = scalar_lea.vmem %s2, %s162
        $region20: #{tpu_custom_call.1} parent=11 // pred_fallthru
          _
      $region12: #{tpu_custom_call.1} parent=5 // pred_fallthru
        _
      %p164 = scmp.lt.s32.totalorder %s15, 2
      // Predicated region
      $region21: #{tpu_custom_call.1} parent=5 // pred_check
        %p165 = pneg %p164
      $region22: #{tpu_custom_call.1} parent=5 // pred_check_branch
        %167 = sbr.rel (%p165) target = $region24
      $region23: #{tpu_custom_call.1} parent=5 // pred_region
        // Predicated region
        $region25: #{tpu_custom_call.1} parent=23 // pred_check
          %p168 = pneg %p49
        $region26: #{tpu_custom_call.1} parent=23 // pred_check_branch
          %170 = sbr.rel (%p168) target = $region28
        $region27: #{tpu_custom_call.1} parent=23 // pred_region
          %s171 = sand.u32 %s39, 1
          %s172 = scalar_lea.sflag [#allocation3], %s171
          %s173 = sand.u32 %s39, 1
          %s174 = smul.addr %s173, 4
          %s175 = scalar_lea.vmem [#allocation2], %s174
          %s177 = ssub.s32 64, 64
          %178 = vsyncadd %s172, %s177
          %s179 = sadd.s32 %s22, %s23
          %s180 = smul.addr %s179, 64
          %s181 = scalar_lea.hbm %s0, %s180
          %s183 = sshll.u32 %s175, 4
          %s184 = int_to_ptr.vmem [resolvable:$true] %s183
          %186 = dma.hbm_to_vmem [thread:$0]  %s181, 64, %s184, %s172
        $region28: #{tpu_custom_call.1} parent=23 // pred_fallthru
          _
      $region24: #{tpu_custom_call.1} parent=5 // pred_fallthru
        _
      %p187 = scmp.le.s32.totalorder 1, %s15
      %p188 = scmp.lt.s32.totalorder %s15, 3
      %p189 = pnand %p187, %p188
      %p190 = pneg %p189
      // Predicated region
      $region29: #{tpu_custom_call.1} parent=5 // pred_check
        _
      $region30: #{tpu_custom_call.1} parent=5 // pred_check_branch
        %192 = sbr.rel (%p189) target = $region32
      $region31: #{tpu_custom_call.1} parent=5 // pred_region
        %s193 = ssub.s32 %s15, 1
        %s194 = sand.u32 %s42, 1
        %s195 = scalar_lea.sflag [#allocation3], %s194
        %s196 = sand.u32 %s42, 1
        %s197 = smul.addr %s196, 4
        %s198 = scalar_lea.vmem [#allocation2], %s197
        // Predicated region
        $region33: #{tpu_custom_call.1} parent=31 // pred_check
          %p199 = pneg %p55
        $region34: #{tpu_custom_call.1} parent=31 // pred_check_branch
          %201 = sbr.rel (%p199) target = $region36
        $region35: #{tpu_custom_call.1} parent=31 // pred_region
          %202 = dma.done %s195, 64
        $region36: #{tpu_custom_call.1} parent=31 // pred_fallthru
          _
        %s203 = sand.u32 %s42, 1
        %s204 = scalar_lea.sflag [#allocation3], %s203
        %s205 = sand.u32 %s42, 1
        %s206 = smul.addr %s205, 4
        %s207 = scalar_lea.vmem [#allocation2], %s206
        %p208 = pneg %p55
        %p209 = pneg %p52
        %p210 = scmp.lt.s32.totalorder %s24, 0
        %s211 = scalar_select %p210, %s24, 0
        %s212 = smul.addr %s211, 4
        %s213 = scalar_lea.vmem %s1, %s212
        %p214 = pneg %p81
        %p215 = pneg %p78
        %p216 = scmp.lt.s32.totalorder %s24, 0
        %s217 = scalar_select %p216, %s24, 0
        %s218 = smul.addr %s217, 4
        %s219 = scalar_lea.vmem %s2, %s218
        %p220 = pneg %p107
        %p221 = pneg %p104
        %p222 = pneg %p135
        %p223 = pneg %p132
        %s224 = sand.u32 %s122, 1
        %s225 = scalar_lea.sflag [#allocation4], %s224
        %s226 = sand.u32 %s122, 1
        %s227 = smul.addr %s226, 4
        %s228 = scalar_lea.vmem [#allocation5], %s227
        %p229 = scmp.lt.s32.totalorder %s24, 0
        %s230 = scalar_select %p229, %s24, 0
        %s231 = smul.addr %s230, 4
        %s232 = scalar_lea.vmem %s1, %s231
        %p233 = scmp.lt.s32.totalorder %s24, 0
        %s234 = scalar_select %p233, %s24, 0
        %s235 = smul.addr %s234, 4
        %s236 = scalar_lea.vmem %s2, %s235
        %v237 = vld [vmem:[%s232] sm:$0xf]
        %v238 = vld [vmem:[%s236] sm:$0xf]
        %240 = vset.pattern.permute.xlu0 0
        %241 = vperm.xlu0 %240, %v238
        %v242 = vpop.permute.xlu0 %241
        %v244 = vld [vmem:[%s198] sm:$0xf]
        %246 = vrot.lane.b32.xlu0 %v244, 1
        %v247 = vpop.permute.xlu0 %246
        %vm249 = vcmask 7168
        %v250 = vsel %vm249, 0.0, %v247
        %vm251 = vcmask 138240
        %v252 = vsel %vm251, %v250, 0.0
        %254 = vset.pattern.permute.xlu0 0
        %255 = vperm.xlu0 %254, %v237
        %v256 = vpop.permute.xlu0 %255
        %v258 = vmul.f32 %v256, %v252
        %v259 = vadd.f32 %v242, %v258
        %260 = vset.pattern.permute.xlu0 1
        %261 = vperm.xlu0 %260, %v237
        %v262 = vpop.permute.xlu0 %261
        %v264 = vmul.f32 %v262, %v252
        %266 = vrot.lane.b32.xlu0 %v264, 127
        %v267 = vpop.permute.xlu0 %266
        %v269 = vadd.f32 %v259, %v267
        %270 = vset.pattern.permute.xlu0 2
        %271 = vperm.xlu0 %270, %v237
        %v272 = vpop.permute.xlu0 %271
        %v274 = vmul.f32 %v272, %v252
        %276 = vrot.lane.b32.xlu0 %v274, 126
        %v277 = vpop.permute.xlu0 %276
        %v279 = vadd.f32 %v269, %v277
        %vm280 = vcmask 125952
        %281 = vst.msk [vmem:[%s228] sm:$0xf] %vm280, %v279
        %s282 = sand.u32 %s122, 1
        %s283 = scalar_lea.sflag [#allocation4], %s282
        %s284 = sand.u32 %s122, 1
        %s285 = smul.addr %s284, 4
        %s286 = scalar_lea.vmem [#allocation5], %s285
        // Predicated region
        $region37: #{tpu_custom_call.1} parent=31 // pred_check
          %p287 = pneg %p132
        $region38: #{tpu_custom_call.1} parent=31 // pred_check_branch
          %289 = sbr.rel (%p287) target = $region40
        $region39: #{tpu_custom_call.1} parent=31 // pred_region
          %s291 = ssub.s32 64, 64
          %292 = vsyncadd %s283, %s291
          %s293 = sadd.s32 %s24, %s25
          %s294 = smul.addr %s293, 64
          %s295 = scalar_lea.hbm %s3, %s294
          %s297 = sshll.u32 %s286, 4
          %s298 = int_to_ptr.vmem [resolvable:$true] %s297
          %300 = dma.vmem_to_hbm [thread:$0]  %s298, 64, %s295, %s283
        $region40: #{tpu_custom_call.1} parent=31 // pred_fallthru
          _
      $region32: #{tpu_custom_call.1} parent=5 // pred_fallthru
        _
      %p301 = scmp.le.s32.totalorder 2, %s15
      // Predicated region
      $region41: #{tpu_custom_call.1} parent=5 // pred_check
        %p302 = pneg %p301
      $region42: #{tpu_custom_call.1} parent=5 // pred_check_branch
        %304 = sbr.rel (%p302) target = $region44
      $region43: #{tpu_custom_call.1} parent=5 // pred_region
        %s305 = ssub.s32 %s15, 2
        // Predicated region
        $region45: #{tpu_custom_call.1} parent=43 // pred_check
          %p306 = pneg %p138
        $region46: #{tpu_custom_call.1} parent=43 // pred_check_branch
          %308 = sbr.rel (%p306) target = $region48
        $region47: #{tpu_custom_call.1} parent=43 // pred_region
          %s309 = sand.u32 %s123, 1
          %s310 = scalar_lea.sflag [#allocation4], %s309
          %s311 = sand.u32 %s123, 1
          %s312 = smul.addr %s311, 4
          %s313 = scalar_lea.vmem [#allocation5], %s312
          %314 = dma.done %s310, 64
        $region48: #{tpu_custom_call.1} parent=43 // pred_fallthru
          _
      $region44: #{tpu_custom_call.1} parent=5 // pred_fallthru
        _
    $region6: #{tpu_custom_call.1} parent=1 // loop_footer
      %s19 = sadd.s32 1, %s15
    $region7: #{tpu_custom_call.1} parent=1 // loop_footer_branch
      %14 = sbr.rel target = $region3
    $region8: #{tpu_custom_call.1} parent=1 // loop_exit
      _
    %315 = vsyncpa [#allocation3], 1
    %s316 = scalar_lea.sflag [#allocation3], 1
    %317 = vsyncpa %s316, 1
    %318 = vsyncpa [#allocation4], 1
    %s319 = scalar_lea.sflag [#allocation4], 1
    %320 = vsyncpa %s319, 1

</llo_original>
